<compile_context>
chip_gen: v6e
topology: v6e:2x2x1
jax: 0.10.0
libtpu: 0.0.40
codegen_flags: <defaults>
</compile_context>

<pallas_src>
import jax
import jax.numpy as jnp
from jax import lax
from jax.experimental import pallas as pl
from jax.experimental.pallas import tpu as pltpu


def _dwconv_kernel(w_sref, b_sref, x_ref, o_ref, acc_ref):
    """3x3 depthwise conv (padding=1) on one block of channel planes.

    w_sref : SMEM (9, N*C) f32     per-channel taps, k = 3*kh + kw
    b_sref : SMEM (N*C,)   f32     per-channel bias
    x_ref  : VMEM (nc_tile, H, W)  input block (flat batch*channel planes)
    o_ref  : VMEM (nc_tile, H, W)  output block
    acc_ref: VMEM (H, W) f32       per-plane accumulator scratch
    """
    nc_tile, H, W = x_ref.shape
    c_base = pl.program_id(0) * nc_tile

    # Loop-invariant zero strip for the horizontal halo.
    zcol = jnp.zeros((H, 1), jnp.float32)

    def one_plane(c, carry):
        cg = c_base + c                          # flat (batch*channel) index
        xc = x_ref[c].astype(jnp.float32)        # (H, W) -- cast once
        # Lane-shifted copies with the zero halo baked in:
        #   x_l[h, w] = x[h, w-1] (0 at w == 0); x_r[h, w] = x[h, w+1] (0 at w == W-1)
        x_l = jnp.concatenate([zcol, xc[:, : W - 1]], axis=1)
        x_r = jnp.concatenate([xc[:, 1:], zcol], axis=1)

        def row_filter(kh):
            # Horizontal 1-D filter of kernel row `kh`; SMEM scalars broadcast free.
            return (x_l * w_sref[3 * kh + 0, cg]
                    + xc * w_sref[3 * kh + 1, cg]
                    + x_r * w_sref[3 * kh + 2, cg])

        # Centre kernel row needs no vertical shift: seed the accumulator.
        acc_ref[...] = row_filter(1) + b_sref[cg]
        if H > 1:
            # Top kernel row reads input row h-1: add, shifted down one row.
            acc_ref[pl.ds(1, H - 1), :] += row_filter(0)[: H - 1, :]
            # Bottom kernel row reads input row h+1: add, shifted up one row.
            acc_ref[pl.ds(0, H - 1), :] += row_filter(2)[1:, :]

        o_ref[c] = acc_ref[...].astype(o_ref.dtype)
        return carry

    lax.fori_loop(0, nc_tile, one_plane, 0)


def _pick_plane_tile(n_planes, H, W, in_itemsize, out_itemsize, vmem_limit_bytes):
    """Largest divisor of n_planes whose pipelined block footprint fits VMEM,
    keeping >= 2 grid steps when possible so both v7x TensorCores are fed."""
    S = H * W
    temps = 16 * S * 4                    # generous allowance for f32 temporaries
    budget = int(vmem_limit_bytes * 0.6)  # leave headroom for compiler scratch

    def footprint(d):
        # 2x double-buffered input + 2x double-buffered output + temporaries.
        return 2 * d * S * in_itemsize + 2 * d * S * out_itemsize + temps

    best = 1
    for d in range(1, n_planes + 1):
        if n_planes % d:
            continue
        if footprint(d) > budget:
            continue
        if d == n_planes and n_planes >= 2:
            continue                      # keep at least 2 grid steps (v7x: 2 TCs)
        best = d
    return best


def depthwise_conv(x_nchw, weight, bias, *, nc_tile=None, vmem_limit_bytes=None):
    """nn.Conv2d(C, C, 3, padding=1, groups=C) forward.

    x_nchw: (N, C, H, W); weight: (C, 1, 3, 3); bias: (C,).
    Returns (N, C, H, W) in x_nchw.dtype (accumulation in f32).
    """
    N, C, H, W = x_nchw.shape
    NC = N * C
    x_flat = x_nchw.reshape(NC, H, W)     # free: contiguous reshape, no transpose

    # (C, 1, 3, 3) -> (9, C) tap table (k = 3*kh + kw), tiled per batch so the
    # flat plane index n*C + c selects the right channel's taps; bias likewise.
    w9c = jnp.transpose(weight[:, 0].reshape(C, 9), (1, 0)).astype(jnp.float32)
    w_tab = jnp.tile(w9c, (1, N))                         # (9, N*C)
    b_tab = jnp.tile(bias.astype(jnp.float32), N)         # (N*C,)

    if vmem_limit_bytes is None:
        try:
            cap = int(pltpu.get_tpu_info().vmem_capacity_bytes)
        except Exception:
            cap = 64 * 1024 * 1024        # conservative fallback (v7x-sized)
        # ~3/4 of physical VMEM: ~48 MiB on v7x, ~96-100 MiB on v5e/v6e.
        vmem_limit_bytes = max(32 * 1024 * 1024,
                               min(3 * cap // 4, 112 * 1024 * 1024))

    if nc_tile is None:
        nc_tile = _pick_plane_tile(NC, H, W, x_nchw.dtype.itemsize,
                                   x_nchw.dtype.itemsize, vmem_limit_bytes)
    assert NC % nc_tile == 0

    out_flat = pl.pallas_call(
        _dwconv_kernel,
        out_shape=jax.ShapeDtypeStruct((NC, H, W), x_nchw.dtype),
        grid_spec=pltpu.PrefetchScalarGridSpec(
            num_scalar_prefetch=2,        # weights + bias live in SMEM, no per-step DMA
            grid=(NC // nc_tile,),
            in_specs=[pl.BlockSpec((nc_tile, H, W), lambda g, wt, bt: (g, 0, 0))],
            out_specs=pl.BlockSpec((nc_tile, H, W), lambda g, wt, bt: (g, 0, 0)),
            scratch_shapes=[pltpu.VMEM((H, W), jnp.float32)],
        ),
        compiler_params=pltpu.CompilerParams(
            dimension_semantics=("parallel",),
            vmem_limit_bytes=int(vmem_limit_bytes),
        ),
    )(w_tab, b_tab, x_flat)
    return out_flat.reshape(N, C, H, W)


if __name__ == "__main__":
    key = jax.random.PRNGKey(0)
    kx, kw, kb = jax.random.split(key, 3)

    N, C, H, W = 2, 4, 16, 16
    x = jax.random.normal(kx, (N, C, H, W), dtype=jnp.float32)
    # nn.Conv2d(channels, channels, 3, padding=1, groups=channels) parameters:
    # weight (C, 1, 3, 3), bias (C,) -- deterministic synthetic init.
    weight = jax.random.normal(kw, (C, 1, 3, 3), dtype=jnp.float32) * 0.1
    bias = jax.random.normal(kb, (C,), dtype=jnp.float32) * 0.1

    out = depthwise_conv(x, weight, bias)
    out = jax.block_until_ready(out)

    # Cross-check against XLA's grouped conv (same semantics as nn.Conv2d).
    ref = lax.conv_general_dilated(
        x, weight, window_strides=(1, 1), padding=((1, 1), (1, 1)),
        dimension_numbers=("NCHW", "OIHW", "NCHW"),
        feature_group_count=C) + bias.reshape(1, C, 1, 1)
    assert out.shape == (N, C, H, W)
    assert jnp.allclose(out, ref, atol=1e-5), "f32 mismatch vs reference conv"

    # bf16 activation path: halves HBM traffic, accumulation stays in f32.
    out_bf16 = depthwise_conv(x.astype(jnp.bfloat16), weight, bias)
    out_bf16 = jax.block_until_ready(out_bf16)
    assert out_bf16.dtype == jnp.bfloat16
    assert jnp.allclose(out_bf16.astype(jnp.float32), ref, atol=1e-1), \
        "bf16 mismatch vs reference conv"

    print("KERNEL_OK")
</pallas_src>

<mosaic_0001>
module attributes {stable_mosaic.version = 11 : i64} {
  func.func @_dwconv_kernel(%arg0: i32, %arg1: memref<9x8xf32, #tpu.memory_space<smem>>, %arg2: memref<8xf32, #tpu.memory_space<smem>>, %arg3: memref<4x16x16xf32, #tpu.memory_space<vmem>>, %arg4: memref<4x16x16xf32, #tpu.memory_space<vmem>>, %arg5: memref<16x16xf32, #tpu.memory_space<vmem>>) attributes {dimension_semantics = [#tpu.dimension_semantics<parallel>], iteration_bounds = array<i64: 2>, scalar_prefetch = 2 : i64, scratch_operands = 1 : i64, tpu.core_type = #tpu.core_type<tc>, window_params = [{transform_indices = @transform_0, window_bounds = array<i64: 4, 16, 16>}, {transform_indices = @transform_1, window_bounds = array<i64: 4, 16, 16>}]} {
    %c4_i32 = arith.constant 4 : i32
    %0 = arith.muli %arg0, %c4_i32 : i32
    %cst = arith.constant 0.000000e+00 : f32
    %1 = vector.broadcast %cst : f32 to vector<16x1xf32>
    %c0_i32 = arith.constant 0 : i32
    %c4_i32_0 = arith.constant 4 : i32
    %2 = arith.addi %c0_i32, %c4_i32_0 : i32
    %c1_i32 = arith.constant 1 : i32
    scf.for %arg6 = %c0_i32 to %2 step %c1_i32  : i32 {
      %3 = arith.addi %0, %arg6 : i32
      %4 = arith.index_cast %arg6 : i32 to index
      %c0 = arith.constant 0 : index
      %c0_2 = arith.constant 0 : index
      %5 = vector.load %arg3[%4, %c0, %c0_2] : memref<4x16x16xf32, #tpu.memory_space<vmem>>, vector<1x16x16xf32>
      %6 = vector.shape_cast %5 : vector<1x16x16xf32> to vector<16x16xf32>
      %7 = vector.extract_strided_slice %6 {offsets = [0, 0], sizes = [16, 15], strides = [1, 1]} : vector<16x16xf32> to vector<16x15xf32>
      %8 = tpu.concatenate %1, %7 in 1 : vector<16x1xf32>, vector<16x15xf32> -> vector<16x16xf32>
      %9 = vector.extract_strided_slice %6 {offsets = [0, 1], sizes = [16, 15], strides = [1, 1]} : vector<16x16xf32> to vector<16x15xf32>
      %10 = tpu.concatenate %9, %1 in 1 : vector<16x15xf32>, vector<16x1xf32> -> vector<16x16xf32>
      %c3 = arith.constant 3 : index
      %11 = arith.index_cast %3 : i32 to index
      %12 = memref.load %arg1[%c3, %11] : memref<9x8xf32, #tpu.memory_space<smem>>
      %13 = vector.broadcast %12 : f32 to vector<16x16xf32>
      %14 = arith.mulf %8, %13 : vector<16x16xf32>
      %c4 = arith.constant 4 : index
      %15 = arith.index_cast %3 : i32 to index
      %16 = memref.load %arg1[%c4, %15] : memref<9x8xf32, #tpu.memory_space<smem>>
      %17 = vector.broadcast %16 : f32 to vector<16x16xf32>
      %18 = arith.mulf %6, %17 : vector<16x16xf32>
      %19 = arith.addf %14, %18 : vector<16x16xf32>
      %c5 = arith.constant 5 : index
      %20 = arith.index_cast %3 : i32 to index
      %21 = memref.load %arg1[%c5, %20] : memref<9x8xf32, #tpu.memory_space<smem>>
      %22 = vector.broadcast %21 : f32 to vector<16x16xf32>
      %23 = arith.mulf %10, %22 : vector<16x16xf32>
      %24 = arith.addf %19, %23 : vector<16x16xf32>
      %25 = arith.index_cast %3 : i32 to index
      %26 = memref.load %arg2[%25] : memref<8xf32, #tpu.memory_space<smem>>
      %27 = vector.broadcast %26 : f32 to vector<16x16xf32>
      %28 = arith.addf %24, %27 : vector<16x16xf32>
      %c0_3 = arith.constant 0 : index
      %c0_4 = arith.constant 0 : index
      %29 = vector.load %arg5[%c0_3, %c0_4] : memref<16x16xf32, #tpu.memory_space<vmem>>, vector<16x16xf32>
      tpu.vector_store %arg5[%c0_3, %c0_4], %28 {strides = array<i32>} : memref<16x16xf32, #tpu.memory_space<vmem>>, vector<16x16xf32>,
      %c1 = arith.constant 1 : index
      %c0_5 = arith.constant 0 : index
      %30 = vector.load %arg5[%c1, %c0_5] : memref<16x16xf32, #tpu.memory_space<vmem>>, vector<15x16xf32>
      %c0_6 = arith.constant 0 : index
      %31 = arith.index_cast %3 : i32 to index
      %32 = memref.load %arg1[%c0_6, %31] : memref<9x8xf32, #tpu.memory_space<smem>>
      %33 = vector.broadcast %32 : f32 to vector<16x16xf32>
      %34 = arith.mulf %8, %33 : vector<16x16xf32>
      %c1_7 = arith.constant 1 : index
      %35 = arith.index_cast %3 : i32 to index
      %36 = memref.load %arg1[%c1_7, %35] : memref<9x8xf32, #tpu.memory_space<smem>>
      %37 = vector.broadcast %36 : f32 to vector<16x16xf32>
      %38 = arith.mulf %6, %37 : vector<16x16xf32>
      %39 = arith.addf %34, %38 : vector<16x16xf32>
      %c2 = arith.constant 2 : index
      %40 = arith.index_cast %3 : i32 to index
      %41 = memref.load %arg1[%c2, %40] : memref<9x8xf32, #tpu.memory_space<smem>>
      %42 = vector.broadcast %41 : f32 to vector<16x16xf32>
      %43 = arith.mulf %10, %42 : vector<16x16xf32>
      %44 = arith.addf %39, %43 : vector<16x16xf32>
      %45 = vector.extract_strided_slice %44 {offsets = [0, 0], sizes = [15, 16], strides = [1, 1]} : vector<16x16xf32> to vector<15x16xf32>
      %46 = arith.addf %30, %45 : vector<15x16xf32>
      %c1_8 = arith.constant 1 : index
      %c0_9 = arith.constant 0 : index
      %47 = vector.load %arg5[%c1_8, %c0_9] : memref<16x16xf32, #tpu.memory_space<vmem>>, vector<15x16xf32>
      tpu.vector_store %arg5[%c1_8, %c0_9], %46 {strides = array<i32>} : memref<16x16xf32, #tpu.memory_space<vmem>>, vector<15x16xf32>,
      %c0_10 = arith.constant 0 : index
      %c0_11 = arith.constant 0 : index
      %48 = vector.load %arg5[%c0_10, %c0_11] : memref<16x16xf32, #tpu.memory_space<vmem>>, vector<15x16xf32>
      %c6 = arith.constant 6 : index
      %49 = arith.index_cast %3 : i32 to index
      %50 = memref.load %arg1[%c6, %49] : memref<9x8xf32, #tpu.memory_space<smem>>
      %51 = vector.broadcast %50 : f32 to vector<16x16xf32>
      %52 = arith.mulf %8, %51 : vector<16x16xf32>
      %c7 = arith.constant 7 : index
      %53 = arith.index_cast %3 : i32 to index
      %54 = memref.load %arg1[%c7, %53] : memref<9x8xf32, #tpu.memory_space<smem>>
      %55 = vector.broadcast %54 : f32 to vector<16x16xf32>
      %56 = arith.mulf %6, %55 : vector<16x16xf32>
      %57 = arith.addf %52, %56 : vector<16x16xf32>
      %c8 = arith.constant 8 : index
      %58 = arith.index_cast %3 : i32 to index
      %59 = memref.load %arg1[%c8, %58] : memref<9x8xf32, #tpu.memory_space<smem>>
      %60 = vector.broadcast %59 : f32 to vector<16x16xf32>
      %61 = arith.mulf %10, %60 : vector<16x16xf32>
      %62 = arith.addf %57, %61 : vector<16x16xf32>
      %63 = vector.extract_strided_slice %62 {offsets = [1, 0], sizes = [15, 16], strides = [1, 1]} : vector<16x16xf32> to vector<15x16xf32>
      %64 = arith.addf %48, %63 : vector<15x16xf32>
      %c0_12 = arith.constant 0 : index
      %c0_13 = arith.constant 0 : index
      %65 = vector.load %arg5[%c0_12, %c0_13] : memref<16x16xf32, #tpu.memory_space<vmem>>, vector<15x16xf32>
      tpu.vector_store %arg5[%c0_12, %c0_13], %64 {strides = array<i32>} : memref<16x16xf32, #tpu.memory_space<vmem>>, vector<15x16xf32>,
      %c0_14 = arith.constant 0 : index
      %c0_15 = arith.constant 0 : index
      %66 = vector.load %arg5[%c0_14, %c0_15] : memref<16x16xf32, #tpu.memory_space<vmem>>, vector<16x16xf32>
      %67 = arith.index_cast %arg6 : i32 to index
      %c0_16 = arith.constant 0 : index
      %c0_17 = arith.constant 0 : index
      %68 = vector.load %arg4[%67, %c0_16, %c0_17] : memref<4x16x16xf32, #tpu.memory_space<vmem>>, vector<1x16x16xf32>
      %69 = vector.shape_cast %68 : vector<1x16x16xf32> to vector<16x16xf32>
      %70 = vector.shape_cast %66 : vector<16x16xf32> to vector<1x16x16xf32>
      tpu.vector_store %arg4[%67, %c0_16, %c0_17], %70 {strides = array<i32>} : memref<4x16x16xf32, #tpu.memory_space<vmem>>, vector<1x16x16xf32>,
    }
    %c4_i32_1 = arith.constant 4 : i32
    return
  }
  func.func @transform_0(%arg0: i32, %arg1: memref<9x8xf32, #tpu.memory_space<smem>>, %arg2: memref<8xf32, #tpu.memory_space<smem>>) -> (i32, i32, i32) {
    %c0_i32 = arith.constant 0 : i32
    %c0_i32_0 = arith.constant 0 : i32
    %c0_i32_1 = arith.constant 0 : i32
    return %arg0, %c0_i32, %c0_i32_0 : i32, i32, i32
  }
  func.func @transform_1(%arg0: i32, %arg1: memref<9x8xf32, #tpu.memory_space<smem>>, %arg2: memref<8xf32, #tpu.memory_space<smem>>) -> (i32, i32, i32) {
    %c0_i32 = arith.constant 0 : i32
    %c0_i32_0 = arith.constant 0 : i32
    %c0_i32_1 = arith.constant 0 : i32
    return %arg0, %c0_i32, %c0_i32_0 : i32, i32, i32
  }
}

</mosaic_0001>

<llo_original>
// kernel: tpu_custom_call.1
$region0: #{tpu_custom_call.1}
  #allocation0 [shape = 'u32[]', space=smem, size = 0x4, offset = 0x4, fixed_abs, tag = 'smem constant byte address 0x4 - core index']
  #allocation1 [shape = 'u32[144,128]{1,0:T(1,128)}', space=vmem, size = 0x12000, scoped, tag = 'internal scratch']
  #allocation2 [shape = 'f32[16,16]{1,0:T(8,128)}', space=vmem, size = 0x2000, scoped, tag = 'scratch operand']
  #allocation3 [shape = 's32[1]{0}', space=sflag, size = 0x4, scoped, tag = 'scoped memory for tpu_custom_call.1']
  #allocation4 [shape = 'u8[8192]{0}', space=smem, size = 0x2000, scoped, tag = 'prefetched SMEM operand 0']
  #allocation5 [shape = 'u8[512]{0}', space=smem, size = 0x200, scoped, tag = 'prefetched SMEM operand 1']
  %s0 = inlined_call_operand.vmem [shape: f32[9,8], index: 0, kind: input, shape index: {}]
  %s1 = inlined_call_operand.vmem [shape: f32[8], index: 1, kind: input, shape index: {}]
  %s2 = inlined_call_operand.hbm [shape: f32[8,16,16], index: 2, kind: input, shape index: {}]
  %s3 = inlined_call_operand.hbm [shape: f32[8,16,16], index: 3, kind: output, shape index: {}]
  %s4 = sld [smem:[#allocation0]]
  $region48: #{tpu_custom_call.1} parent=0
    _
  %s6 = ssub.s32 1, %s4
  %s7 = scalar_select 0, %s6, %s4
  %s8 = sshll.u32 %s0, 4
  %s9 = int_to_ptr.vmem [resolvable:$true] %s8
  %11 = dma.vmem_to_smem %s9, 256, [#allocation4], [#allocation3]
  %s12 = sshll.u32 %s1, 4
  %s13 = int_to_ptr.vmem [resolvable:$true] %s12
  %15 = dma.vmem_to_smem %s13, 16, [#allocation5], [#allocation3]
  %16 = dma.done [#allocation3], 272
  %17 = sfence
  $region1: #{tpu_custom_call.1} parent=0
    #allocation6 [shape = 'u8[65536]{0}', space=vmem, size = 0x10000, scoped, tag = 'input window, operand 2']
    #allocation7 [shape = 's32[2]{0}', space=sflag, size = 0x8, scoped, tag = 'scoped memory for tpu_custom_call.1']
    #allocation8 [shape = 's32[2]{0}', space=sflag, size = 0x8, scoped, tag = 'scoped memory for tpu_custom_call.1']
    #allocation9 [shape = 'u8[65536]{0}', space=vmem, size = 0x10000, scoped, tag = 'output window, operand 0']
    %18 = vsyncpa [#allocation7], 0
    %s19 = scalar_lea.sflag [#allocation7], 1
    %20 = vsyncpa %s19, 0
    %21 = vsyncpa [#allocation8], 0
    %s22 = scalar_lea.sflag [#allocation8], 1
    %23 = vsyncpa %s22, 0
    loop: start=0, step=1, limit=4
    $region2: #{tpu_custom_call.1} parent=1 // loop_pre_header
      _
    $region3: #{tpu_custom_call.1} parent=1 // loop_header
      %s25 = sphi 0, %s29
      %p26 = scmp.ge.s32.totalorder %s25, 4
      %s35 = sphi 0, %s37
      %s38 = sphi 0, %s35
      %s39 = sphi 0, %s38
      %s55 = sphi 0, %s39
      %s61 = sphi 0, %s63
      %s64 = sphi 0, %s61
      %s65 = sphi 0, %s64
      %s81 = sphi 0, %s65
    $region4: #{tpu_custom_call.1} parent=1 // loop_header_branch
      %28 = sbr.rel (%p26) target = $region8
    $region5: #{tpu_custom_call.1} parent=1 // loop_body
      %s30 = ssub.s32 %s25, 1
      %s31 = ssub.s32 %s25, 2
      %s32 = sadd.s32 %s25, 1
      %s33 = ssub.s32 %s25, %s32
      %p34 = scmp.eq.s32.totalorder %s33, 0
      %s36 = sadd.s32 %s35, 1
      %s37 = scalar_select %p34, %s35, %s36
      %p40 = pneg %p34
      %p41 = scmp.eq.s32.totalorder %s25, 1
      %p42 = por %p40, %p41
      %p43 = scmp.ne.s32.totalorder %s35, %s38
      %p44 = scmp.eq.s32.totalorder %s25, 0
      %p45 = por %p43, %p44
      %p46 = scmp.ne.s32.totalorder %s35, %s38
      %p47 = scmp.eq.s32.totalorder %s30, 1
      %p48 = por %p46, %p47
      %p49 = scmp.ne.s32.totalorder %s38, %s39
      %p50 = scmp.eq.s32.totalorder %s30, 0
      %p51 = por %p49, %p50
      %p52 = scmp.ne.s32.totalorder %s38, %s39
      %p53 = scmp.eq.s32.totalorder %s31, 1
      %p54 = por %p52, %p53
      %p56 = scmp.ne.s32.totalorder %s39, %s55
      %p57 = scmp.eq.s32.totalorder %s31, 0
      %p58 = por %p56, %p57
      %s59 = ssub.s32 %s25, %s32
      %p60 = scmp.eq.s32.totalorder %s59, 0
      %s62 = sadd.s32 %s61, 1
      %s63 = scalar_select %p60, %s61, %s62
      %p66 = pneg %p60
      %p67 = scmp.eq.s32.totalorder %s25, 1
      %p68 = por %p66, %p67
      %p69 = scmp.ne.s32.totalorder %s61, %s64
      %p70 = scmp.eq.s32.totalorder %s25, 0
      %p71 = por %p69, %p70
      %p72 = scmp.ne.s32.totalorder %s61, %s64
      %p73 = scmp.eq.s32.totalorder %s30, 1
      %p74 = por %p72, %p73
      %p75 = scmp.ne.s32.totalorder %s64, %s65
      %p76 = scmp.eq.s32.totalorder %s30, 0
      %p77 = por %p75, %p76
      %p78 = scmp.ne.s32.totalorder %s64, %s65
      %p79 = scmp.eq.s32.totalorder %s31, 1
      %p80 = por %p78, %p79
      %p82 = scmp.ne.s32.totalorder %s65, %s81
      %p83 = scmp.eq.s32.totalorder %s31, 0
      %p84 = por %p82, %p83
      %p85 = scmp.le.s32.totalorder 1, %s25
      %p86 = scmp.lt.s32.totalorder %s25, 3
      %p87 = pnand %p85, %p86
      %p88 = pneg %p87
      // Predicated region
      $region9: #{tpu_custom_call.1} parent=5 // pred_check
        _
      $region10: #{tpu_custom_call.1} parent=5 // pred_check_branch
        %90 = sbr.rel (%p87) target = $region12
      $region11: #{tpu_custom_call.1} parent=5 // pred_region
        %s91 = ssub.s32 %s25, 1
      $region12: #{tpu_custom_call.1} parent=5 // pred_fallthru
        _
      %p92 = scmp.lt.s32.totalorder %s25, 2
      // Predicated region
      $region13: #{tpu_custom_call.1} parent=5 // pred_check
        %p93 = pneg %p92
      $region14: #{tpu_custom_call.1} parent=5 // pred_check_branch
        %95 = sbr.rel (%p93) target = $region16
      $region15: #{tpu_custom_call.1} parent=5 // pred_region
        // Predicated region
        $region17: #{tpu_custom_call.1} parent=15 // pred_check
          %p96 = pneg %p45
        $region18: #{tpu_custom_call.1} parent=15 // pred_check_branch
          %98 = sbr.rel (%p96) target = $region20
        $region19: #{tpu_custom_call.1} parent=15 // pred_region
          %s99 = sand.u32 %s35, 1
          %s100 = scalar_lea.sflag [#allocation7], %s99
          %s101 = sand.u32 %s35, 1
          %s102 = smul.addr %s101, 64
          %s103 = scalar_lea.vmem [#allocation6], %s102
          %s104 = smul.u32 4, %s25
          %s106 = ssub.s32 1024, 1024
          %107 = vsyncadd %s100, %s106
          %s108 = smul.addr %s104, 2
          %s109 = smul.addr %s108, 128
          %s110 = scalar_lea.hbm %s2, %s109
          %s111 = sshll.u32 %s103, 4
          %s112 = int_to_ptr.vmem [resolvable:$true] %s111
          %117 = dma.hbm_to_vmem [thread:$0]  %s110, 1024, %s112, %s100, 128, 128, 8
        $region20: #{tpu_custom_call.1} parent=15 // pred_fallthru
          _
      $region16: #{tpu_custom_call.1} parent=5 // pred_fallthru
        _
      %p118 = scmp.le.s32.totalorder 1, %s25
      %p119 = scmp.lt.s32.totalorder %s25, 3
      %p120 = pnand %p118, %p119
      %p121 = pneg %p120
      // Predicated region
      $region21: #{tpu_custom_call.1} parent=5 // pred_check
        _
      $region22: #{tpu_custom_call.1} parent=5 // pred_check_branch
        %123 = sbr.rel (%p120) target = $region24
      $region23: #{tpu_custom_call.1} parent=5 // pred_region
        %s124 = ssub.s32 %s25, 1
        %s125 = sand.u32 %s38, 1
        %s126 = scalar_lea.sflag [#allocation7], %s125
        %s127 = sand.u32 %s38, 1
        %s128 = smul.addr %s127, 64
        %s129 = scalar_lea.vmem [#allocation6], %s128
        // Predicated region
        $region25: #{tpu_custom_call.1} parent=23 // pred_check
          %p130 = pneg %p51
        $region26: #{tpu_custom_call.1} parent=23 // pred_check_branch
          %132 = sbr.rel (%p130) target = $region28
        $region27: #{tpu_custom_call.1} parent=23 // pred_region
          %133 = dma.done %s126, 1024
        $region28: #{tpu_custom_call.1} parent=23 // pred_fallthru
          _
        %s134 = sand.u32 %s38, 1
        %s135 = scalar_lea.sflag [#allocation7], %s134
        %s136 = sand.u32 %s38, 1
        %s137 = smul.addr %s136, 64
        %s138 = scalar_lea.vmem [#allocation6], %s137
        %p139 = pneg %p51
        %p140 = pneg %p48
        %p141 = pneg %p77
        %p142 = pneg %p74
        %s143 = sand.u32 %s64, 1
        %s144 = scalar_lea.sflag [#allocation8], %s143
        %s145 = sand.u32 %s64, 1
        %s146 = smul.addr %s145, 64
        %s147 = scalar_lea.vmem [#allocation9], %s146
        %s148 = smul.u32 4, %s30
        %s149 = smul.u32 4, %s30
        %s150 = smul.u32 %s30, 4
        loop: start=0, step=1, limit=4
        $region29: #{tpu_custom_call.1} parent=23 // loop_pre_header
          _
        $region30: #{tpu_custom_call.1} parent=23 // loop_header
          %s152 = sphi 0, %s156
          %p153 = scmp.ge.s32.totalorder %s152, 4
        $region31: #{tpu_custom_call.1} parent=23 // loop_header_branch
          %155 = sbr.rel (%p153) target = $region35
        $region32: #{tpu_custom_call.1} parent=23 // loop_body
          %s157 = sadd.s32 %s150, %s152
          %s158 = smul.u32 %s152, 16
          %s159 = scalar_lea.vmem %s129, %s158 [#allocation6]
          %v160 = vld [vmem:[%s159] sm:$0xff]
          %v161 = vld [vmem:[%s159 + $0x8] sm:$0xff]
          %164 = vrot.lane.b32.xlu0 %v160, 1
          %v165 = vpop.permute.xlu0 %164
          %166 = vrot.lane.b32.xlu0 %v161, 1
          %v167 = vpop.permute.xlu0 %166
          %vm170 = vcmask 7168
          %v171 = vsel %vm170, 0.0, %v165
          %v172 = vsel %vm170, 0.0, %v167
          %173 = vrot.lane.b32.xlu0 %v160, 127
          %v174 = vpop.permute.xlu0 %173
          %175 = vrot.lane.b32.xlu0 %v161, 127
          %v176 = vpop.permute.xlu0 %175
          %vm179 = vcmask 121856
          %v180 = vsel %vm179, %v174, 0.0
          %v181 = vsel %vm179, %v176, 0.0
          %s182 = sshra.s32 %s157, 7
          %s183 = sand.u32 %s157, 127
          %s184 = sadd.s32 %s182, 3
          %s185 = smul.u32 %s184, 128
          %s186 = sshra.s32 %s157, 7
          %s187 = sand.u32 %s157, 127
          %s188 = sadd.s32 %s185, %s187
          %s189 = sld [smem:[#allocation4 + %s188]]
          %v190 = vstv %s189
          %v191 = vmul.f32 %v171, %v190
          %v192 = vmul.f32 %v172, %v190
          %s193 = sadd.s32 %s182, 4
          %s194 = smul.u32 %s193, 128
          %s195 = sadd.s32 %s194, %s187
          %s196 = sld [smem:[#allocation4 + %s195]]
          %v197 = vstv %s196
          %v198 = vmul.f32 %v160, %v197
          %v199 = vmul.f32 %v161, %v197
          %v200 = vadd.f32 %v191, %v198
          %v201 = vadd.f32 %v192, %v199
          %s202 = sadd.s32 %s182, 5
          %s203 = smul.u32 %s202, 128
          %s204 = sadd.s32 %s203, %s187
          %s205 = sld [smem:[#allocation4 + %s204]]
          %v206 = vstv %s205
          %v207 = vmul.f32 %v180, %v206
          %v208 = vmul.f32 %v181, %v206
          %v209 = vadd.f32 %v200, %v207
          %v210 = vadd.f32 %v201, %v208
          %s211 = sld [smem:[#allocation5 + %s157]]
          %v212 = vstv %s211
          %v213 = vadd.f32 %v209, %v212
          %v214 = vadd.f32 %v210, %v212
          %vm215 = vcmask 130048
          %216 = vst.msk [vmem:[#allocation2] sm:$0xff] %vm215, %v213
          %217 = vst.msk [vmem:[#allocation2 + $0x8] sm:$0xff] %vm215, %v214
          %v218 = vld [vmem:[#allocation2 + $0x1] sm:$0xff]
          %v219 = vld [vmem:[#allocation2 + $0x9] sm:$0x7f]
          %s220 = sld [smem:[#allocation4 + %s157]]
          %v221 = vstv %s220
          %v222 = vmul.f32 %v171, %v221
          %v223 = vmul.f32 %v172, %v221
          %s224 = sadd.s32 %s182, 1
          %s225 = smul.u32 %s224, 128
          %s226 = sadd.s32 %s225, %s187
          %s227 = sld [smem:[#allocation4 + %s226]]
          %v228 = vstv %s227
          %v229 = vmul.f32 %v160, %v228
          %v230 = vmul.f32 %v161, %v228
          %v231 = vadd.f32 %v222, %v229
          %v232 = vadd.f32 %v223, %v230
          %s233 = sadd.s32 %s182, 2
          %s234 = smul.u32 %s233, 128
          %s235 = sadd.s32 %s234, %s187
          %s236 = sld [smem:[#allocation4 + %s235]]
          %v237 = vstv %s236
          %v238 = vmul.f32 %v180, %v237
          %v239 = vmul.f32 %v181, %v237
          %v240 = vadd.f32 %v231, %v238
          %v241 = vadd.f32 %v232, %v239
          %v242 = vadd.f32 %v218, %v240
          %v243 = vadd.f32 %v219, %v241
          %244 = vst.msk [vmem:[#allocation2 + $0x1] sm:$0xff] %vm215, %v242
          %vm245 = vcmask 129024
          %246 = vst.msk [vmem:[#allocation2 + $0x9] sm:$0x7f] %vm245, %v243
          %v247 = vld [vmem:[#allocation2] sm:$0xff]
          %v248 = vld [vmem:[#allocation2 + $0x8] sm:$0x7f]
          %s249 = sadd.s32 %s182, 6
          %s250 = smul.u32 %s249, 128
          %s251 = sadd.s32 %s250, %s187
          %s252 = sld [smem:[#allocation4 + %s251]]
          %v253 = vstv %s252
          %v254 = vmul.f32 %v171, %v253
          %v255 = vmul.f32 %v172, %v253
          %s256 = sadd.s32 %s182, 7
          %s257 = smul.u32 %s256, 128
          %s258 = sadd.s32 %s257, %s187
          %s259 = sld [smem:[#allocation4 + %s258]]
          %v260 = vstv %s259
          %v261 = vmul.f32 %v160, %v260
          %v262 = vmul.f32 %v161, %v260
          %v263 = vadd.f32 %v254, %v261
          %v264 = vadd.f32 %v255, %v262
          %s265 = sadd.s32 %s182, 8
          %s266 = smul.u32 %s265, 128
          %s267 = sadd.s32 %s266, %s187
          %s268 = sld [smem:[#allocation4 + %s267]]
          %v269 = vstv %s268
          %v270 = vmul.f32 %v180, %v269
          %v271 = vmul.f32 %v181, %v269
          %v272 = vadd.f32 %v263, %v270
          %v273 = vadd.f32 %v264, %v271
          %vm276 = vcmask 1046528
          %v277 = vrot.slane %v272, 1
          %v278 = vrot.slane %v273, 1
          %v279 = vsel %vm276, %v277, %v278
          %v282 = vadd.f32 %v247, %v279
          %v283 = vadd.f32 %v248, %v278
          %284 = vst.msk [vmem:[#allocation2] sm:$0xff] %vm215, %v282
          %285 = vst.msk [vmem:[#allocation2 + $0x8] sm:$0x7f] %vm245, %v283
          %v286 = vld [vmem:[#allocation2] sm:$0xff]
          %v287 = vld [vmem:[#allocation2 + $0x8] sm:$0xff]
          %s288 = scalar_lea.vmem %s147, %s158 [#allocation9]
          %289 = vst.msk [vmem:[%s288] sm:$0xff] %vm215, %v286
          %290 = vst.msk [vmem:[%s288 + $0x8] sm:$0xff] %vm215, %v287
        $region33: #{tpu_custom_call.1} parent=23 // loop_footer
          %s156 = sadd.s32 1, %s152
        $region34: #{tpu_custom_call.1} parent=23 // loop_footer_branch
          %151 = sbr.rel target = $region30
        $region35: #{tpu_custom_call.1} parent=23 // loop_exit
          _
        %s291 = sand.u32 %s64, 1
        %s292 = scalar_lea.sflag [#allocation8], %s291
        %s293 = sand.u32 %s64, 1
        %s294 = smul.addr %s293, 64
        %s295 = scalar_lea.vmem [#allocation9], %s294
        // Predicated region
        $region36: #{tpu_custom_call.1} parent=23 // pred_check
          %p296 = pneg %p74
        $region37: #{tpu_custom_call.1} parent=23 // pred_check_branch
          %298 = sbr.rel (%p296) target = $region39
        $region38: #{tpu_custom_call.1} parent=23 // pred_region
          %s299 = smul.u32 4, %s30
          %s301 = ssub.s32 1024, 1024
          %302 = vsyncadd %s292, %s301
          %s303 = smul.addr %s299, 2
          %s304 = smul.addr %s303, 128
          %s305 = scalar_lea.hbm %s3, %s304
          %s306 = sshll.u32 %s295, 4
          %s307 = int_to_ptr.vmem [resolvable:$true] %s306
          %312 = dma.vmem_to_hbm [thread:$0]  %s307, 1024, %s305, %s292, 128, 128, 8
        $region39: #{tpu_custom_call.1} parent=23 // pred_fallthru
          _
      $region24: #{tpu_custom_call.1} parent=5 // pred_fallthru
        _
      %p313 = scmp.le.s32.totalorder 2, %s25
      // Predicated region
      $region40: #{tpu_custom_call.1} parent=5 // pred_check
        %p314 = pneg %p313
      $region41: #{tpu_custom_call.1} parent=5 // pred_check_branch
        %316 = sbr.rel (%p314) target = $region43
      $region42: #{tpu_custom_call.1} parent=5 // pred_region
        %s317 = ssub.s32 %s25, 2
        // Predicated region
        $region44: #{tpu_custom_call.1} parent=42 // pred_check
          %p318 = pneg %p80
        $region45: #{tpu_custom_call.1} parent=42 // pred_check_branch
          %320 = sbr.rel (%p318) target = $region47
        $region46: #{tpu_custom_call.1} parent=42 // pred_region
          %s321 = sand.u32 %s65, 1
          %s322 = scalar_lea.sflag [#allocation8], %s321
          %s323 = sand.u32 %s65, 1
          %s324 = smul.addr %s323, 64
          %s325 = scalar_lea.vmem [#allocation9], %s324
          %326 = dma.done %s322, 1024
        $region47: #{tpu_custom_call.1} parent=42 // pred_fallthru
          _
      $region43: #{tpu_custom_call.1} parent=5 // pred_fallthru
        _
    $region6: #{tpu_custom_call.1} parent=1 // loop_footer
      %s29 = sadd.s32 1, %s25
    $region7: #{tpu_custom_call.1} parent=1 // loop_footer_branch
      %24 = sbr.rel target = $region3
    $region8: #{tpu_custom_call.1} parent=1 // loop_exit
      _
    %327 = vsyncpa [#allocation7], 1
    %s328 = scalar_lea.sflag [#allocation7], 1
    %329 = vsyncpa %s328, 1
    %330 = vsyncpa [#allocation8], 1
    %s331 = scalar_lea.sflag [#allocation8], 1
    %332 = vsyncpa %s331, 1

</llo_original>
